<compile_context>
chip_gen: v5e
topology: v5e:2x2
jax: 0.10.0
libtpu: 0.0.40
codegen_flags: <defaults>
</compile_context>

<pallas_src>
import functools

import numpy as np
import jax
import jax.numpy as jnp
from jax.experimental import pallas as pl
from jax.experimental.pallas import tpu as pltpu


OUT_LANES = 128            # lane-dense output slab; sliced to top_k in wrapper
_VMEM_BUDGET = 28 << 20    # target for kernel buffers (fits v7x 32 MiB scoped)


def _round_up(n, m):
    return ((n + m - 1) // m) * m


def _pick_tm(T, per_token_bytes, fixed_bytes, x_bytes):
    """Largest token tile (multiple of 8) that fits the VMEM budget."""
    budget = max(_VMEM_BUDGET - fixed_bytes, 2 << 20)
    tm = max(8, (budget // per_token_bytes) // 8 * 8)
    tm = min(tm, 1024 if x_bytes <= 2 else 512)
    # >= 2 steps on the 'parallel' token axis (v7x dual-TC) and never tile
    # wider than the 8-aligned token count.
    half = _round_up(max(-(-T // 2), 1), 8)
    return max(8, min(tm, half))


def _topk_softmax(logits, scores_ref, idx_ref, num_experts, top_k):
    """VPU/XLU epilogue: iterative top-k + softmax over the selected values."""
    tm, e_pad = logits.shape
    out_lanes = scores_ref.shape[-1]
    neg = jnp.float32(-jnp.inf)

    col_e = jax.lax.broadcasted_iota(jnp.int32, (tm, e_pad), 1)
    col_o = jax.lax.broadcasted_iota(jnp.int32, (tm, out_lanes), 1)

    # Padded expert lanes can never be selected.
    cur = jnp.where(col_e < num_experts, logits, neg)

    vals = jnp.zeros((tm, out_lanes), jnp.float32)
    idxs = jnp.zeros((tm, out_lanes), jnp.int32)

    # Iterative argmax: top_k is tiny (e.g. 2) -> fully unrolled.
    # Ties pick the smallest expert index (matches jax.lax.top_k).
    for j in range(top_k):
        m = jnp.max(cur, axis=-1, keepdims=True)                    # (tm, 1)
        amax = jnp.min(jnp.where(cur == m, col_e, e_pad),
                       axis=-1, keepdims=True)                      # (tm, 1)
        vals = jnp.where(col_o == j, m, vals)
        idxs = jnp.where(col_o == j, amax, idxs)
        cur = jnp.where(col_e == amax, neg, cur)

    # Softmax over the top_k selected values (f32, as in the reference).
    sel = col_o < top_k
    vmax = jnp.max(jnp.where(sel, vals, neg), axis=-1, keepdims=True)
    e = jnp.exp(jnp.where(sel, vals - vmax, neg))                   # 0 in pad
    scores = e / jnp.sum(e, axis=-1, keepdims=True)

    scores_ref[...] = scores.astype(scores_ref.dtype)
    idx_ref[...] = idxs


def _router_kernel_fused(x_ref, w_ref, scores_ref, idx_ref, *,
                         num_experts, top_k):
    # x_ref: (tm, dim)   w_ref: (dim, E_pad) -- VMEM-resident (constant index)
    logits = jnp.dot(x_ref[...], w_ref[...],
                     preferred_element_type=jnp.float32)
    _topk_softmax(logits, scores_ref, idx_ref, num_experts, top_k)


def _router_kernel_ktiled(x_ref, w_ref, scores_ref, idx_ref, acc_ref, *,
                          num_experts, top_k):
    # Fallback for very large dim: contraction tiled, f32 resident accumulator.
    k = pl.program_id(1)

    @pl.when(k == 0)
    def _():
        acc_ref[...] = jnp.zeros_like(acc_ref)

    acc_ref[...] += jnp.dot(x_ref[...], w_ref[...],
                            preferred_element_type=jnp.float32)

    @pl.when(k == pl.num_programs(1) - 1)
    def _():
        _topk_softmax(acc_ref[...], scores_ref, idx_ref, num_experts, top_k)


@functools.partial(jax.jit, static_argnames=("top_k",))
def _router_pallas(x2, gate_weight, *, top_k):
    T, dim = x2.shape
    num_experts = gate_weight.shape[0]
    assert top_k <= num_experts and top_k <= OUT_LANES

    x_bytes = x2.dtype.itemsize
    e_pad = _round_up(max(num_experts, 1), 128)

    # Gate weight transposed/padded once per call (tiny vs. x traffic):
    # [E, dim] -> [dim, E_pad], cast to the activation dtype for the MXU.
    w_t = jnp.transpose(gate_weight).astype(x2.dtype)
    if e_pad != num_experts:
        w_t = jnp.pad(w_t, ((0, 0), (0, e_pad - num_experts)))

    out_row_bytes = 2 * OUT_LANES * (x_bytes + 4)        # scores + idx, 2-buf
    weight_resident = 2 * dim * e_pad * x_bytes          # double-buffered

    # Primary path: full-dim x tiles + VMEM-resident weight (no k grid axis).
    fused = (weight_resident + 16 * dim * x_bytes + 16 * out_row_bytes
             <= _VMEM_BUDGET)

    if fused:
        per_token = 2 * dim * x_bytes + out_row_bytes
        tm = _pick_tm(T, per_token, weight_resident, x_bytes)
        t_pad = _round_up(max(T, 1), tm)
        x_in = x2 if t_pad == T else jnp.pad(x2, ((0, t_pad - T), (0, 0)))

        lane_dim = _round_up(dim, 128)
        buf_bytes = (2 * tm * lane_dim * x_bytes          # x tiles (2 buffers)
                     + weight_resident                    # resident weight
                     + tm * out_row_bytes)                # outputs (2 buffers)
        vmem_limit = int(buf_bytes + (8 << 20))

        kernel = functools.partial(_router_kernel_fused,
                                   num_experts=num_experts, top_k=top_k)
        grid = (t_pad // tm,)
        in_specs = [
            pl.BlockSpec((tm, dim), lambda i: (i, 0)),
            pl.BlockSpec((dim, e_pad), lambda i: (0, 0)),  # fetched once
        ]
        out_specs = [
            pl.BlockSpec((tm, OUT_LANES), lambda i: (i, 0)),
            pl.BlockSpec((tm, OUT_LANES), lambda i: (i, 0)),
        ]
        scratch = []
        dim_sem = ("parallel",)
        operands = (x_in, w_t)
    else:
        # Very large dim: tile the contraction. Prefer a tk that divides dim
        # exactly (no x pad on the contraction axis).
        tk = None
        start = min(2048, _round_up(dim, 128))
        for cand in range(start, 0, -128):
            if dim % cand == 0:
                tk = cand
                break
        if tk is None:
            tk = min(2048, _round_up(dim, 128))
        k_pad = _round_up(dim, tk)

        fixed = 2 * tk * e_pad * x_bytes                  # weight tiles
        per_token = 2 * tk * x_bytes + out_row_bytes + e_pad * 4
        tm = _pick_tm(T, per_token, fixed, x_bytes)
        t_pad = _round_up(max(T, 1), tm)

        if t_pad != T or k_pad != dim:
            x_in = jnp.pad(x2, ((0, t_pad - T), (0, k_pad - dim)))
        else:
            x_in = x2
        w_in = w_t if k_pad == dim else jnp.pad(w_t, ((0, k_pad - dim), (0, 0)))

        buf_bytes = (2 * tm * tk * x_bytes + fixed
                     + tm * out_row_bytes + tm * e_pad * 4)
        vmem_limit = int(buf_bytes + (8 << 20))

        kernel = functools.partial(_router_kernel_ktiled,
                                   num_experts=num_experts, top_k=top_k)
        grid = (t_pad // tm, k_pad // tk)
        in_specs = [
            pl.BlockSpec((tm, tk), lambda i, k: (i, k)),
            pl.BlockSpec((tk, e_pad), lambda i, k: (k, 0)),
        ]
        out_specs = [
            pl.BlockSpec((tm, OUT_LANES), lambda i, k: (i, 0)),
            pl.BlockSpec((tm, OUT_LANES), lambda i, k: (i, 0)),
        ]
        scratch = [pltpu.VMEM((tm, e_pad), jnp.float32)]
        dim_sem = ("parallel", "arbitrary")
        operands = (x_in, w_in)

    cost = pl.CostEstimate(
        flops=2 * t_pad * dim * num_experts,
        transcendentals=t_pad * top_k,
        bytes_accessed=(t_pad * dim * x_bytes + dim * e_pad * x_bytes
                        + t_pad * OUT_LANES * (x_bytes + 4)),
    )

    scores_pad, idx_pad = pl.pallas_call(
        kernel,
        out_shape=(
            jax.ShapeDtypeStruct((t_pad, OUT_LANES), x2.dtype),
            jax.ShapeDtypeStruct((t_pad, OUT_LANES), jnp.int32),
        ),
        grid_spec=pltpu.PrefetchScalarGridSpec(
            num_scalar_prefetch=0,
            grid=grid,
            in_specs=in_specs,
            out_specs=out_specs,
            scratch_shapes=scratch),
        compiler_params=pltpu.CompilerParams(
            dimension_semantics=dim_sem,
            vmem_limit_bytes=vmem_limit),
        cost_estimate=cost,
    )(*operands)

    return scores_pad[:T, :top_k], idx_pad[:T, :top_k]


def topk_router_forward(x, gate_weight, top_k):
    """Pallas implementation of TopKRouter.forward.

    x:           [..., dim]
    gate_weight: [num_experts, dim]   (nn.Linear(dim, num_experts).weight)
    Returns:     (scores [..., top_k] in x.dtype, indices [..., top_k] int32)
    """
    # TODO(synk): indices are int32 (torch.topk returns int64); values match.
    dim = x.shape[-1]
    lead = x.shape[:-1]
    x2 = x.reshape(-1, dim)
    scores, idx = _router_pallas(x2, gate_weight, top_k=int(top_k))
    return scores.reshape(*lead, top_k), idx.reshape(*lead, top_k)


def _reference_forward(x, gate_weight, top_k):
    logits = jnp.einsum("...d,ed->...e", x, gate_weight,
                        precision=jax.lax.Precision.HIGHEST)
    vals, idx = jax.lax.top_k(logits, top_k)
    scores = jax.nn.softmax(vals.astype(jnp.float32), axis=-1).astype(x.dtype)
    return scores, idx


if __name__ == "__main__":
    # Small shapes consistent with the module: batch=2, seq=8, hidden=32.
    dim = 32
    num_experts = 8
    top_k = 2
    batch, seq = 2, 8
    init_std = 0.02

    key = jax.random.PRNGKey(0)
    kx, kw = jax.random.split(key)
    x = jax.random.normal(kx, (batch, seq, dim), dtype=jnp.float32)
    # Deterministic trunc-normal init (matches nn.init.trunc_normal_ semantics).
    gate_weight = init_std * jax.random.truncated_normal(
        kw, -2.0, 2.0, (num_experts, dim), dtype=jnp.float32)

    scores, idx = topk_router_forward(x, gate_weight, top_k)
    scores, idx = jax.block_until_ready((scores, idx))

    ref_scores, ref_idx = _reference_forward(x, gate_weight, top_k)

    np.testing.assert_allclose(np.asarray(scores), np.asarray(ref_scores),
                               rtol=1e-4, atol=1e-5)
    np.testing.assert_array_equal(np.asarray(idx), np.asarray(ref_idx))
    assert scores.shape == (batch, seq, top_k)
    assert idx.shape == (batch, seq, top_k)
    assert scores.dtype == x.dtype

    print("KERNEL_OK")
</pallas_src>

<mosaic_0001>
module attributes {stable_mosaic.version = 11 : i64} {
  func.func @_router_kernel_fused(%arg0: i32, %arg1: memref<8x32xf32, #tpu.memory_space<vmem>>, %arg2: memref<32x128xf32, #tpu.memory_space<vmem>>, %arg3: memref<8x128xf32, #tpu.memory_space<vmem>>, %arg4: memref<8x128xi32, #tpu.memory_space<vmem>>) attributes {dimension_semantics = [#tpu.dimension_semantics<parallel>], iteration_bounds = array<i64: 2>, scalar_prefetch = 0 : i64, scratch_operands = 0 : i64, tpu.core_type = #tpu.core_type<tc>, window_params = [{transform_indices = @transform_0, window_bounds = array<i64: 8, 32>}, {pipeline_mode = #tpu.pipeline_mode<synchronous>, transform_indices = @transform_1, window_bounds = array<i64: 32, 128>}, {transform_indices = @transform_2, window_bounds = array<i64: 8, 128>}, {transform_indices = @transform_3, window_bounds = array<i64: 8, 128>}]} {
    %c0 = arith.constant 0 : index
    %c0_0 = arith.constant 0 : index
    %0 = vector.load %arg1[%c0, %c0_0] : memref<8x32xf32, #tpu.memory_space<vmem>>, vector<8x32xf32>
    %c0_1 = arith.constant 0 : index
    %c0_2 = arith.constant 0 : index
    %1 = vector.load %arg2[%c0_1, %c0_2] : memref<32x128xf32, #tpu.memory_space<vmem>>, vector<32x128xf32>
    %cst = arith.constant dense<0.000000e+00> : vector<8x128xf32>
    %2 = tpu.matmul %0, %1, %cst {dimension_numbers = #tpu.dot_dimension_numbers<[1], [0], [0], [1], [0, 0, 1, 1], [], []>} : vector<8x32xf32>, vector<32x128xf32>, vector<8x128xf32> -> vector<8x128xf32>
    %3 = tpu.iota {dimensions = array<i32: 1>} : vector<8x128xi32>
    %4 = tpu.iota {dimensions = array<i32: 1>} : vector<8x128xi32>
    %c8_i32 = arith.constant 8 : i32
    %5 = vector.broadcast %c8_i32 : i32 to vector<8x128xi32>
    %6 = arith.cmpi slt, %3, %5 : vector<8x128xi32>
    %cst_3 = arith.constant 0xFF800000 : f32
    %7 = vector.broadcast %cst_3 : f32 to vector<8x128xf32>
    %8 = arith.select %6, %2, %7 : vector<8x128xi1>, vector<8x128xf32>
    %cst_4 = arith.constant 0.000000e+00 : f32
    %9 = vector.broadcast %cst_4 : f32 to vector<8x128xf32>
    %c0_i32 = arith.constant 0 : i32
    %10 = vector.broadcast %c0_i32 : i32 to vector<8x128xi32>
    %cst_5 = arith.constant dense<0xFF800000> : vector<8xf32>
    %11 = vector.multi_reduction <maximumf>, %8, %cst_5 [1] : vector<8x128xf32> to vector<8xf32>
    %12 = vector.shape_cast %11 : vector<8xf32> to vector<8x1xf32>
    %13 = vector.broadcast %12 : vector<8x1xf32> to vector<8x128xf32>
    %14 = arith.cmpf oeq, %8, %13 : vector<8x128xf32>
    %c128_i32 = arith.constant 128 : i32
    %15 = vector.broadcast %c128_i32 : i32 to vector<8x128xi32>
    %16 = arith.select %14, %3, %15 : vector<8x128xi1>, vector<8x128xi32>
    %cst_6 = arith.constant dense<2147483647> : vector<8xi32>
    %17 = vector.multi_reduction <minsi>, %16, %cst_6 [1] : vector<8x128xi32> to vector<8xi32>
    %18 = vector.shape_cast %17 : vector<8xi32> to vector<8x1xi32>
    %c0_i32_7 = arith.constant 0 : i32
    %19 = vector.broadcast %c0_i32_7 : i32 to vector<8x128xi32>
    %20 = arith.cmpi eq, %4, %19 : vector<8x128xi32>
    %21 = vector.shape_cast %12 : vector<8x1xf32> to vector<8x1xf32>
    %22 = vector.broadcast %21 : vector<8x1xf32> to vector<8x128xf32>
    %23 = arith.select %20, %22, %9 : vector<8x128xi1>, vector<8x128xf32>
    %c0_i32_8 = arith.constant 0 : i32
    %24 = vector.broadcast %c0_i32_8 : i32 to vector<8x128xi32>
    %25 = arith.cmpi eq, %4, %24 : vector<8x128xi32>
    %26 = vector.shape_cast %18 : vector<8x1xi32> to vector<8x1xi32>
    %27 = vector.broadcast %26 : vector<8x1xi32> to vector<8x128xi32>
    %28 = arith.select %25, %27, %10 : vector<8x128xi1>, vector<8x128xi32>
    %29 = vector.broadcast %18 : vector<8x1xi32> to vector<8x128xi32>
    %30 = arith.cmpi eq, %3, %29 : vector<8x128xi32>
    %cst_9 = arith.constant 0xFF800000 : f32
    %31 = vector.broadcast %cst_9 : f32 to vector<8x128xf32>
    %32 = arith.select %30, %31, %8 : vector<8x128xi1>, vector<8x128xf32>
    %cst_10 = arith.constant dense<0xFF800000> : vector<8xf32>
    %33 = vector.multi_reduction <maximumf>, %32, %cst_10 [1] : vector<8x128xf32> to vector<8xf32>
    %34 = vector.shape_cast %33 : vector<8xf32> to vector<8x1xf32>
    %35 = vector.broadcast %34 : vector<8x1xf32> to vector<8x128xf32>
    %36 = arith.cmpf oeq, %32, %35 : vector<8x128xf32>
    %c128_i32_11 = arith.constant 128 : i32
    %37 = vector.broadcast %c128_i32_11 : i32 to vector<8x128xi32>
    %38 = arith.select %36, %3, %37 : vector<8x128xi1>, vector<8x128xi32>
    %cst_12 = arith.constant dense<2147483647> : vector<8xi32>
    %39 = vector.multi_reduction <minsi>, %38, %cst_12 [1] : vector<8x128xi32> to vector<8xi32>
    %40 = vector.shape_cast %39 : vector<8xi32> to vector<8x1xi32>
    %c1_i32 = arith.constant 1 : i32
    %41 = vector.broadcast %c1_i32 : i32 to vector<8x128xi32>
    %42 = arith.cmpi eq, %4, %41 : vector<8x128xi32>
    %43 = vector.shape_cast %34 : vector<8x1xf32> to vector<8x1xf32>
    %44 = vector.broadcast %43 : vector<8x1xf32> to vector<8x128xf32>
    %45 = arith.select %42, %44, %23 : vector<8x128xi1>, vector<8x128xf32>
    %c1_i32_13 = arith.constant 1 : i32
    %46 = vector.broadcast %c1_i32_13 : i32 to vector<8x128xi32>
    %47 = arith.cmpi eq, %4, %46 : vector<8x128xi32>
    %48 = vector.shape_cast %40 : vector<8x1xi32> to vector<8x1xi32>
    %49 = vector.broadcast %48 : vector<8x1xi32> to vector<8x128xi32>
    %50 = arith.select %47, %49, %28 : vector<8x128xi1>, vector<8x128xi32>
    %c2_i32 = arith.constant 2 : i32
    %51 = vector.broadcast %c2_i32 : i32 to vector<8x128xi32>
    %52 = arith.cmpi slt, %4, %51 : vector<8x128xi32>
    %cst_14 = arith.constant 0xFF800000 : f32
    %53 = vector.broadcast %cst_14 : f32 to vector<8x128xf32>
    %54 = arith.select %52, %45, %53 : vector<8x128xi1>, vector<8x128xf32>
    %cst_15 = arith.constant dense<0xFF800000> : vector<8xf32>
    %55 = vector.multi_reduction <maximumf>, %54, %cst_15 [1] : vector<8x128xf32> to vector<8xf32>
    %56 = vector.shape_cast %55 : vector<8xf32> to vector<8x1xf32>
    %57 = vector.broadcast %56 : vector<8x1xf32> to vector<8x128xf32>
    %58 = arith.subf %45, %57 : vector<8x128xf32>
    %cst_16 = arith.constant 0xFF800000 : f32
    %59 = vector.broadcast %cst_16 : f32 to vector<8x128xf32>
    %60 = arith.select %52, %58, %59 : vector<8x128xi1>, vector<8x128xf32>
    %61 = math.exp %60 : vector<8x128xf32>
    %cst_17 = arith.constant dense<0.000000e+00> : vector<8xf32>
    %62 = vector.multi_reduction <add>, %61, %cst_17 [1] : vector<8x128xf32> to vector<8xf32>
    %63 = vector.shape_cast %62 : vector<8xf32> to vector<8x1xf32>
    %64 = vector.broadcast %63 : vector<8x1xf32> to vector<8x128xf32>
    %65 = arith.divf %61, %64 : vector<8x128xf32>
    %c0_18 = arith.constant 0 : index
    %c0_19 = arith.constant 0 : index
    %66 = vector.load %arg3[%c0_18, %c0_19] : memref<8x128xf32, #tpu.memory_space<vmem>>, vector<8x128xf32>
    tpu.vector_store %arg3[%c0_18, %c0_19], %65 {strides = array<i32>} : memref<8x128xf32, #tpu.memory_space<vmem>>, vector<8x128xf32>,
    %c0_20 = arith.constant 0 : index
    %c0_21 = arith.constant 0 : index
    %67 = vector.load %arg4[%c0_20, %c0_21] : memref<8x128xi32, #tpu.memory_space<vmem>>, vector<8x128xi32>
    tpu.vector_store %arg4[%c0_20, %c0_21], %50 {strides = array<i32>} : memref<8x128xi32, #tpu.memory_space<vmem>>, vector<8x128xi32>,
    return
  }
  func.func @transform_0(%arg0: i32) -> (i32, i32) {
    %c0_i32 = arith.constant 0 : i32
    %c0_i32_0 = arith.constant 0 : i32
    return %arg0, %c0_i32 : i32, i32
  }
  func.func @transform_1(%arg0: i32) -> (i32, i32) {
    %c0_i32 = arith.constant 0 : i32
    %c0_i32_0 = arith.constant 0 : i32
    %c0_i32_1 = arith.constant 0 : i32
    return %c0_i32, %c0_i32_0 : i32, i32
  }
  func.func @transform_2(%arg0: i32) -> (i32, i32) {
    %c0_i32 = arith.constant 0 : i32
    %c0_i32_0 = arith.constant 0 : i32
    return %arg0, %c0_i32 : i32, i32
  }
  func.func @transform_3(%arg0: i32) -> (i32, i32) {
    %c0_i32 = arith.constant 0 : i32
    %c0_i32_0 = arith.constant 0 : i32
    return %arg0, %c0_i32 : i32, i32
  }
}

</mosaic_0001>

<llo_original>
// kernel: _router_pallas.1
$region0: #{_router_pallas.1}
  #allocation0 [shape = 'u32[]', space=smem, size = 0x4, offset = 0x4, fixed_abs, tag = 'smem constant byte address 0x4 - core index']
  #allocation1 [shape = 'u32[72,128]{1,0:T(1,128)}', space=vmem, size = 0x9000, scoped, tag = 'internal scratch']
  %s0 = inlined_call_operand.vmem [shape: f32[16,32], index: 0, kind: input, shape index: {}]
  %s1 = inlined_call_operand.vmem [shape: f32[32,128], index: 1, kind: input, shape index: {}]
  %s2 = inlined_call_operand.vmem [shape: f32[16,128], index: 2, kind: output, shape index: {0}]
  %s3 = inlined_call_operand.vmem [shape: s32[16,128], index: 3, kind: output, shape index: {1}]
  %4 = xla_tuple %s2, %s3
  %s5 = sld [smem:[#allocation0]]
  $region49: #{_router_pallas.1} parent=0
    _
  %s7 = ssub.s32 1, %s5
  %s8 = scalar_select 0, %s7, %s5
  loop: start=0, step=1, limit=4
  $region2: #{_router_pallas.1} parent=0 // loop_pre_header
    _
  $region3: #{_router_pallas.1} parent=0 // loop_header
    %s10 = sphi 0, %s14
    %p11 = scmp.ge.s32.totalorder %s10, 4
    %s20 = sphi 0, %s22
    %s23 = sphi 0, %s20
    %s24 = sphi 0, %s23
    %s40 = sphi 0, %s24
    %s44 = sphi 0, %s44
    %s46 = sphi 0, %s44
    %s47 = sphi 0, %s46
    %s61 = sphi 0, %s47
    %s67 = sphi 0, %s69
    %s70 = sphi 0, %s67
    %s71 = sphi 0, %s70
    %s87 = sphi 0, %s71
    %s93 = sphi 0, %s95
    %s96 = sphi 0, %s93
    %s97 = sphi 0, %s96
    %s113 = sphi 0, %s97
  $region4: #{_router_pallas.1} parent=0 // loop_header_branch
    %13 = sbr.rel (%p11) target = $region8
  $region5: #{_router_pallas.1} parent=0 // loop_body
    %s15 = ssub.s32 %s10, 1
    %s16 = ssub.s32 %s10, 2
    %s17 = sadd.s32 %s10, 1
    %s18 = ssub.s32 %s10, %s17
    %p19 = scmp.eq.s32.totalorder %s18, 0
    %s21 = sadd.s32 %s20, 1
    %s22 = scalar_select %p19, %s20, %s21
    %p25 = pneg %p19
    %p26 = scmp.eq.s32.totalorder %s10, 1
    %p27 = por %p25, %p26
    %p28 = scmp.ne.s32.totalorder %s20, %s23
    %p29 = scmp.eq.s32.totalorder %s10, 0
    %p30 = por %p28, %p29
    %p31 = scmp.ne.s32.totalorder %s20, %s23
    %p32 = scmp.eq.s32.totalorder %s15, 1
    %p33 = por %p31, %p32
    %p34 = scmp.ne.s32.totalorder %s23, %s24
    %p35 = scmp.eq.s32.totalorder %s15, 0
    %p36 = por %p34, %p35
    %p37 = scmp.ne.s32.totalorder %s23, %s24
    %p38 = scmp.eq.s32.totalorder %s16, 1
    %p39 = por %p37, %p38
    %p41 = scmp.ne.s32.totalorder %s24, %s40
    %p42 = scmp.eq.s32.totalorder %s16, 0
    %p43 = por %p41, %p42
    %s45 = sadd.s32 %s44, 1
    %p48 = scmp.eq.s32.totalorder %s10, 1
    %p49 = scmp.ne.s32.totalorder %s44, %s46
    %p50 = scmp.eq.s32.totalorder %s10, 0
    %p51 = por %p49, %p50
    %p52 = scmp.ne.s32.totalorder %s44, %s46
    %p53 = scmp.eq.s32.totalorder %s15, 1
    %p54 = por %p52, %p53
    %p55 = scmp.ne.s32.totalorder %s46, %s47
    %p56 = scmp.eq.s32.totalorder %s15, 0
    %p57 = por %p55, %p56
    %p58 = scmp.ne.s32.totalorder %s46, %s47
    %p59 = scmp.eq.s32.totalorder %s16, 1
    %p60 = por %p58, %p59
    %p62 = scmp.ne.s32.totalorder %s47, %s61
    %p63 = scmp.eq.s32.totalorder %s16, 0
    %p64 = por %p62, %p63
    %s65 = ssub.s32 %s10, %s17
    %p66 = scmp.eq.s32.totalorder %s65, 0
    %s68 = sadd.s32 %s67, 1
    %s69 = scalar_select %p66, %s67, %s68
    %p72 = pneg %p66
    %p73 = scmp.eq.s32.totalorder %s10, 1
    %p74 = por %p72, %p73
    %p75 = scmp.ne.s32.totalorder %s67, %s70
    %p76 = scmp.eq.s32.totalorder %s10, 0
    %p77 = por %p75, %p76
    %p78 = scmp.ne.s32.totalorder %s67, %s70
    %p79 = scmp.eq.s32.totalorder %s15, 1
    %p80 = por %p78, %p79
    %p81 = scmp.ne.s32.totalorder %s70, %s71
    %p82 = scmp.eq.s32.totalorder %s15, 0
    %p83 = por %p81, %p82
    %p84 = scmp.ne.s32.totalorder %s70, %s71
    %p85 = scmp.eq.s32.totalorder %s16, 1
    %p86 = por %p84, %p85
    %p88 = scmp.ne.s32.totalorder %s71, %s87
    %p89 = scmp.eq.s32.totalorder %s16, 0
    %p90 = por %p88, %p89
    %s91 = ssub.s32 %s10, %s17
    %p92 = scmp.eq.s32.totalorder %s91, 0
    %s94 = sadd.s32 %s93, 1
    %s95 = scalar_select %p92, %s93, %s94
    %p98 = pneg %p92
    %p99 = scmp.eq.s32.totalorder %s10, 1
    %p100 = por %p98, %p99
    %p101 = scmp.ne.s32.totalorder %s93, %s96
    %p102 = scmp.eq.s32.totalorder %s10, 0
    %p103 = por %p101, %p102
    %p104 = scmp.ne.s32.totalorder %s93, %s96
    %p105 = scmp.eq.s32.totalorder %s15, 1
    %p106 = por %p104, %p105
    %p107 = scmp.ne.s32.totalorder %s96, %s97
    %p108 = scmp.eq.s32.totalorder %s15, 0
    %p109 = por %p107, %p108
    %p110 = scmp.ne.s32.totalorder %s96, %s97
    %p111 = scmp.eq.s32.totalorder %s16, 1
    %p112 = por %p110, %p111
    %p114 = scmp.ne.s32.totalorder %s97, %s113
    %p115 = scmp.eq.s32.totalorder %s16, 0
    %p116 = por %p114, %p115
    %p117 = scmp.le.s32.totalorder 1, %s10
    %p118 = scmp.lt.s32.totalorder %s10, 3
    %p119 = pnand %p117, %p118
    %p120 = pneg %p119
    // Predicated region
    $region9: #{_router_pallas.1} parent=5 // pred_check
      _
    $region10: #{_router_pallas.1} parent=5 // pred_check_branch
      %122 = sbr.rel (%p119) target = $region12
    $region11: #{_router_pallas.1} parent=5 // pred_region
      %s123 = ssub.s32 %s10, 1
      // Predicated region
      $region13: #{_router_pallas.1} parent=11 // pred_check
        %p124 = pneg %p57
      $region14: #{_router_pallas.1} parent=11 // pred_check_branch
        %126 = sbr.rel (%p124) target = $region16
      $region15: #{_router_pallas.1} parent=11 // pred_region
        _
      $region16: #{_router_pallas.1} parent=11 // pred_fallthru
        _
    $region12: #{_router_pallas.1} parent=5 // pred_fallthru
      _
    %p127 = scmp.lt.s32.totalorder %s10, 2
    // Predicated region
    $region17: #{_router_pallas.1} parent=5 // pred_check
      %p128 = pneg %p127
    $region18: #{_router_pallas.1} parent=5 // pred_check_branch
      %130 = sbr.rel (%p128) target = $region20
    $region19: #{_router_pallas.1} parent=5 // pred_region
      // Predicated region
      $region21: #{_router_pallas.1} parent=19 // pred_check
        %p131 = pneg %p30
      $region22: #{_router_pallas.1} parent=19 // pred_check_branch
        %133 = sbr.rel (%p131) target = $region24
      $region23: #{_router_pallas.1} parent=19 // pred_region
        %p134 = scmp.lt.s32.totalorder %s10, 1
        %s135 = scalar_select %p134, %s10, 1
        %s136 = smul.addr %s135, 8
        %s137 = scalar_lea.vmem %s0, %s136
      $region24: #{_router_pallas.1} parent=19 // pred_fallthru
        _
    $region20: #{_router_pallas.1} parent=5 // pred_fallthru
      _
    %p138 = scmp.le.s32.totalorder 1, %s10
    %p139 = scmp.lt.s32.totalorder %s10, 3
    %p140 = pnand %p138, %p139
    %p141 = pneg %p140
    // Predicated region
    $region25: #{_router_pallas.1} parent=5 // pred_check
      _
    $region26: #{_router_pallas.1} parent=5 // pred_check_branch
      %143 = sbr.rel (%p140) target = $region28
    $region27: #{_router_pallas.1} parent=5 // pred_region
      %s144 = ssub.s32 %s10, 1
      %p145 = scmp.lt.s32.totalorder %s15, 1
      %s146 = scalar_select %p145, %s15, 1
      %s147 = smul.addr %s146, 8
      %s148 = scalar_lea.vmem %s0, %s147
      %p149 = pneg %p36
      %p150 = pneg %p33
      %p151 = pneg %p57
      %p152 = pneg %p54
      %p153 = pneg %p83
      %p154 = pneg %p80
      %p155 = scmp.lt.s32.totalorder %s15, 1
      %s156 = scalar_select %p155, %s15, 1
      %s157 = smul.addr %s156, 8
      %s158 = scalar_lea.vmem %s2, %s157
      %p159 = pneg %p109
      %p160 = pneg %p106
      %p161 = scmp.lt.s32.totalorder %s15, 1
      %s162 = scalar_select %p161, %s15, 1
      %s163 = smul.addr %s162, 8
      %s164 = scalar_lea.vmem %s3, %s163
      %p165 = scmp.lt.s32.totalorder %s15, 1
      %s166 = scalar_select %p165, %s15, 1
      %s167 = smul.addr %s166, 8
      %s168 = scalar_lea.vmem %s0, %s167
      %p169 = scmp.lt.s32.totalorder %s15, 1
      %s170 = scalar_select %p169, %s15, 1
      %s171 = smul.addr %s170, 8
      %s172 = scalar_lea.vmem %s2, %s171
      %p173 = scmp.lt.s32.totalorder %s15, 1
      %s174 = scalar_select %p173, %s15, 1
      %s175 = smul.addr %s174, 8
      %s176 = scalar_lea.vmem %s3, %s175
      %v177 = vld [vmem:[%s168] sm:$0xff]
      %v178 = vld [vmem:[%s1] sm:$0xff]
      %v179 = vld [vmem:[%s1 + $0x8] sm:$0xff]
      %v180 = vld [vmem:[%s1 + $0x10] sm:$0xff]
      %v181 = vld [vmem:[%s1 + $0x18] sm:$0xff]
      %vm182 = vcmask 261120
      %v184 = vsel %vm182, %v177, 0
      %186 = vmatpush.msra.mxu0 0.0
      %187 = vmatpush.msra.mxu0 0.0
      %188 = vmatpush.msra.mxu0 0.0
      %189 = vmatpush.msra.mxu0 0.0
      %190 = vmatpush.msra.mxu0 0.0
      %191 = vmatpush.msra.mxu0 0.0
      %192 = vmatpush.msra.mxu0 0.0
      %193 = vmatpush.msra.mxu0 0.0
      %194 = vmatpush.msra.mxu0 0.0
      %195 = vmatpush.msra.mxu0 0.0
      %196 = vmatpush.msra.mxu0 0.0
      %197 = vmatpush.msra.mxu0 0.0
      %198 = vmatpush.msra.mxu0 %v181
      %199 = vmatpush.msra.mxu0 %v180
      %200 = vmatpush.msra.mxu0 %v179
      %201 = vmatpush.msra.mxu0 %v178
      %202 = vmatmul.f32.gmra.mxu0 %v184
      %v203 = vpop.f32.mrf.mxu0
      %v204 = vadd.f32 0.0, %v203
      %205 = vdwg.mxu0
      %v206 = vlaneseq
      %v207 = vand.u32 %v206, 127
      %vm208 = vcmp.lt.s32.totalorder %v207, 8
      %v209 = vsel %vm208, %v204, -inf
      %210 = vmax.xlane.f32.xlu0 %v209
      %v211 = vpop.xlane.xlu0 %210
      %vm212 = vcmp.eq.f32.partialorder %v209, %v211
      %v213 = vsel %vm212, %v207, 128
      %v214 = vand.u32 %v213, 65535
      %v215 = vshra.s32 %v213, 16
      %v216 = vcvt.s32.f32 %v214
      %v217 = vcvt.s32.f32 %v215
      %218 = vmin.xlane.f32.xlu0 %v217
      %v219 = vpop.xlane.xlu0 %218
      %vm220 = vcmp.eq.f32.partialorder %v217, %v219
      %v221 = vsel %vm220, %v216, inf
      %222 = vmin.xlane.f32.xlu0 %v221
      %v223 = vpop.xlane.xlu0 %222
      %v224 = vcvt.f32.s32 %v223
      %v225 = vcvt.f32.s32 %v219
      %v226 = vshll.u32 %v225, 16
      %v227 = vadd.s32 %v226, %v224
      %vm228 = vcmp.eq.s32.totalorder %v207, 0
      %v229 = vsel %vm228, %v211, 0.0
      %v230 = vsel %vm228, %v227, 0
      %vm231 = vcmp.eq.s32.totalorder %v207, %v227
      %v232 = vsel %vm231, -inf, %v209
      %233 = vmax.xlane.f32.xlu0 %v232
      %v234 = vpop.xlane.xlu0 %233
      %vm235 = vcmp.eq.f32.partialorder %v232, %v234
      %v236 = vsel %vm235, %v207, 128
      %v237 = vand.u32 %v236, 65535
      %v238 = vshra.s32 %v236, 16
      %v239 = vcvt.s32.f32 %v237
      %v240 = vcvt.s32.f32 %v238
      %241 = vmin.xlane.f32.xlu0 %v240
      %v242 = vpop.xlane.xlu0 %241
      %vm243 = vcmp.eq.f32.partialorder %v240, %v242
      %v244 = vsel %vm243, %v239, inf
      %245 = vmin.xlane.f32.xlu0 %v244
      %v246 = vpop.xlane.xlu0 %245
      %v247 = vcvt.f32.s32 %v246
      %v248 = vcvt.f32.s32 %v242
      %v249 = vshll.u32 %v248, 16
      %v250 = vadd.s32 %v249, %v247
      %vm251 = vcmp.eq.s32.totalorder %v207, 1
      %v252 = vsel %vm251, %v234, %v229
      %v253 = vsel %vm251, %v250, %v230
      %vm254 = vcmp.lt.s32.totalorder %v207, 2
      %v255 = vsel %vm254, %v252, -inf
      %256 = vmax.xlane.f32.xlu0 %v255
      %v257 = vpop.xlane.xlu0 %256
      %v258 = vsub.f32 %v252, %v257
      %v259 = vsel %vm254, %v258, -inf
      %v260 = vmul.f32 %v259, 1.442695
      %v261 = vpow.pop %v260
      %262 = vadd.xlane.f32.xlu0 %v261
      %v263 = vpop.xlane.xlu0 %262
      %v264 = vrcp.pop %v263
      %v265 = vmul.f32 %v263, %v264
      %v266 = vsub.f32 1.0, %v265
      %v267 = vmul.f32 %v264, %v266
      %v268 = vadd.f32 %v264, %v267
      %vm269 = vweird.f32 %v263
      %vm270 = vweird.f32 %v264
      %vm271 = vmor %vm269, %vm270
      %v272 = vsel %vm271, %v264, %v268
      %v273 = vand.u32 2147483647, %v263
      %vm274 = vcmp.eq.f32.partialorder %v273, 8.507059e+37
      %v275 = vand.u32 %v263, 2147483648
      %v276 = vor.u32 1.1754944e-38, %v275
      %v277 = vsel %vm274, %v276, %v272
      %v278 = vmul.f32 %v261, %v277
      %279 = vst [vmem:[%s172] sm:$0xff] %v278
      %280 = vst [vmem:[%s176] sm:$0xff] %v253
      %p281 = scmp.lt.s32.totalorder %s15, 1
      %s282 = scalar_select %p281, %s15, 1
      %s283 = smul.addr %s282, 8
      %s284 = scalar_lea.vmem %s2, %s283
      %p285 = scmp.lt.s32.totalorder %s15, 1
      %s286 = scalar_select %p285, %s15, 1
      %s287 = smul.addr %s286, 8
      %s288 = scalar_lea.vmem %s3, %s287
      // Predicated region
      $region29: #{_router_pallas.1} parent=27 // pred_check
        %p289 = pneg %p80
      $region30: #{_router_pallas.1} parent=27 // pred_check_branch
        %291 = sbr.rel (%p289) target = $region32
      $region31: #{_router_pallas.1} parent=27 // pred_region
        _
      $region32: #{_router_pallas.1} parent=27 // pred_fallthru
        _
      // Predicated region
      $region33: #{_router_pallas.1} parent=27 // pred_check
        %p292 = pneg %p106
      $region34: #{_router_pallas.1} parent=27 // pred_check_branch
        %294 = sbr.rel (%p292) target = $region36
      $region35: #{_router_pallas.1} parent=27 // pred_region
        _
      $region36: #{_router_pallas.1} parent=27 // pred_fallthru
        _
    $region28: #{_router_pallas.1} parent=5 // pred_fallthru
      _
    %p295 = scmp.le.s32.totalorder 2, %s10
    // Predicated region
    $region37: #{_router_pallas.1} parent=5 // pred_check
      %p296 = pneg %p295
    $region38: #{_router_pallas.1} parent=5 // pred_check_branch
      %298 = sbr.rel (%p296) target = $region40
    $region39: #{_router_pallas.1} parent=5 // pred_region
      %s299 = ssub.s32 %s10, 2
      // Predicated region
      $region41: #{_router_pallas.1} parent=39 // pred_check
        %p300 = pneg %p86
      $region42: #{_router_pallas.1} parent=39 // pred_check_branch
        %302 = sbr.rel (%p300) target = $region44
      $region43: #{_router_pallas.1} parent=39 // pred_region
        %p303 = scmp.lt.s32.totalorder %s16, 1
        %s304 = scalar_select %p303, %s16, 1
        %s305 = smul.addr %s304, 8
        %s306 = scalar_lea.vmem %s2, %s305
      $region44: #{_router_pallas.1} parent=39 // pred_fallthru
        _
      // Predicated region
      $region45: #{_router_pallas.1} parent=39 // pred_check
        %p307 = pneg %p112
      $region46: #{_router_pallas.1} parent=39 // pred_check_branch
        %309 = sbr.rel (%p307) target = $region48
      $region47: #{_router_pallas.1} parent=39 // pred_region
        %p310 = scmp.lt.s32.totalorder %s16, 1
        %s311 = scalar_select %p310, %s16, 1
        %s312 = smul.addr %s311, 8
        %s313 = scalar_lea.vmem %s3, %s312
      $region48: #{_router_pallas.1} parent=39 // pred_fallthru
        _
    $region40: #{_router_pallas.1} parent=5 // pred_fallthru
      _
  $region6: #{_router_pallas.1} parent=0 // loop_footer
    %s14 = sadd.s32 1, %s10
  $region7: #{_router_pallas.1} parent=0 // loop_footer_branch
    %9 = sbr.rel target = $region3
  $region8: #{_router_pallas.1} parent=0 // loop_exit
    _

</llo_original>
